<compile_context>
chip_gen: v5e
topology: v5e:2x2
jax: 0.10.0
libtpu: 0.0.40
codegen_flags: <defaults>
</compile_context>

<pallas_src>
import functools

import jax
import jax.numpy as jnp
from jax.experimental import pallas as pl
from jax.experimental.pallas import tpu as pltpu

# Fixed fuse weights from DetailAggregateLoss.__init__ (treated as constants).
FUSE_W = (6.0 / 10.0, 3.0 / 10.0, 1.0 / 10.0)


def _shift_lo(x, k, axis):
    """y[..., i, ...] = x[..., i-k, ...] for i >= k, zero-filled below."""
    size = x.shape[axis]
    zshape = x.shape[:axis] + (k,) + x.shape[axis + 1:]
    sl = [slice(None)] * x.ndim
    sl[axis] = slice(0, size - k)
    return jnp.concatenate([jnp.zeros(zshape, x.dtype), x[tuple(sl)]], axis=axis)


def _shift_hi(x, k, axis):
    """y[..., i, ...] = x[..., i+k, ...] for i < size-k, zero-filled above."""
    size = x.shape[axis]
    zshape = x.shape[:axis] + (k,) + x.shape[axis + 1:]
    sl = [slice(None)] * x.ndim
    sl[axis] = slice(k, size)
    return jnp.concatenate([x[tuple(sl)], jnp.zeros(zshape, x.dtype)], axis=axis)


def _detail_kernel(gt_ref, logit_ref, bce_ref, dice_ref, *, H, W, NB, OUT_LANES):
    f32 = jnp.float32
    gt = gt_ref[...]        # (NB, H, W) float32 masks
    x = logit_ref[...]      # (NB, H, W) float32 logits (C == 1)

    # 3x3 laplacian, zero padding: 8*c - sum(8 neighbors) == 9*c - box3x3.
    rows = gt + _shift_lo(gt, 1, 1) + _shift_hi(gt, 1, 1)
    box = rows + _shift_lo(rows, 1, 2) + _shift_hi(rows, 1, 2)
    raw = 9.0 * gt - box

    # clamp(min=0) followed by (>0.1 -> 1, else 0)  ==  (raw > 0.1).
    t1 = (raw > 0.1).astype(f32)

    # stride-2 / stride-4 conv + nearest upsample == floor the row/col index to
    # a multiple of 2 / 4 (requires H % 4 == 0 and W % 4 == 0; checked in wrapper).
    ri = jax.lax.broadcasted_iota(jnp.int32, (NB, H, W), 1)
    ci = jax.lax.broadcasted_iota(jnp.int32, (NB, H, W), 2)
    f2r = jnp.where((ri & 1) == 0, raw, _shift_lo(raw, 1, 1))    # rows floored to 2
    f4r = jnp.where((ri & 3) < 2, f2r, _shift_lo(f2r, 2, 1))     # rows floored to 4
    r2 = jnp.where((ci & 1) == 0, f2r, _shift_lo(f2r, 1, 2))     # + cols floored to 2
    r4 = jnp.where((ci & 1) == 0, f4r, _shift_lo(f4r, 1, 2))
    r4 = jnp.where((ci & 3) < 2, r4, _shift_lo(r4, 2, 2))        # + cols floored to 4
    t2 = (r2 > 0.1).astype(f32)
    t4 = (r4 > 0.1).astype(f32)

    # 1x1 fuse conv over the 3-level pyramid, then threshold.
    fused = FUSE_W[0] * t1 + FUSE_W[1] * t2 + FUSE_W[2] * t4
    target = (fused > 0.1).astype(f32)

    # BCE-with-logits (stable form) and sigmoid share exp(-|x|).
    e = jnp.exp(-jnp.abs(x))
    bce = jnp.maximum(x, 0.0) - x * target + jnp.log(1.0 + e)
    inv = pl.reciprocal(1.0 + e, approx=True)
    sig = jnp.where(x >= 0.0, inv, e * inv)

    def _sum2(v):  # (NB, H, W) -> (NB, 1) per-sample sum
        return jnp.sum(jnp.sum(v, axis=2), axis=1, keepdims=True)

    bce_sum = _sum2(bce)
    inter = _sum2(sig * target)
    isum = _sum2(sig)
    tsum = _sum2(target)
    dice = 1.0 - (2.0 * inter + 1.0) / (isum + tsum + 1.0)

    # Lane-broadcast scalar-per-sample results so the store is lane-dense.
    bce_ref[0, :, :] = jnp.broadcast_to(bce_sum, (NB, OUT_LANES))
    dice_ref[0, :, :] = jnp.broadcast_to(dice, (NB, OUT_LANES))


def detail_aggregate_loss(boundary_logits, gtmasks):
    N, H, W = gtmasks.shape
    if boundary_logits.shape[-2:] != (H, W):
        # TODO(synk): bilinear (align_corners=True) resize of the logits when
        # spatial sizes differ is not implemented.
        raise NotImplementedError("logit / gt spatial sizes must match")
    if H % 4 != 0 or W % 4 != 0:
        # TODO(synk): general nearest-upsample index map (floor(i*out/in)) for
        # H or W not divisible by 4 is not implemented in the shift-based path.
        raise NotImplementedError("H and W must be multiples of 4")

    logits = boundary_logits.reshape(N, H, W).astype(jnp.float32)
    gt = gtmasks.astype(jnp.float32)

    # Batch-block size: pack as many samples per grid step as a ~24 MiB VMEM
    # compute budget allows (double-buffered inputs + ~f32 temporaries).
    per_sample_bytes = H * W * 4 * 20
    nb = int(max(1, min(N, 128, (24 * 2**20) // per_sample_bytes)))
    num_blocks = -(-N // nb)
    n_pad = num_blocks * nb
    if n_pad != N:
        gt = jnp.pad(gt, ((0, n_pad - N), (0, 0), (0, 0)))
        logits = jnp.pad(logits, ((0, n_pad - N), (0, 0), (0, 0)))
    # TODO(synk): very large H*W on v7x (64 MiB VMEM) would additionally need a
    # spatial row-tile grid axis with a halo; not needed at these sizes.

    out_lanes = 128
    kernel = functools.partial(_detail_kernel, H=H, W=W, NB=nb, OUT_LANES=out_lanes)
    vmem_limit = int(min(max(nb * per_sample_bytes, 16 * 2**20), 64 * 2**20))

    bce_out, dice_out = pl.pallas_call(
        kernel,
        out_shape=(jax.ShapeDtypeStruct((num_blocks, nb, out_lanes), jnp.float32),
                   jax.ShapeDtypeStruct((num_blocks, nb, out_lanes), jnp.float32)),
        grid=(num_blocks,),
        in_specs=[
            pl.BlockSpec((nb, H, W), lambda g: (g, 0, 0)),   # gt masks
            pl.BlockSpec((nb, H, W), lambda g: (g, 0, 0)),   # logits
        ],
        out_specs=(pl.BlockSpec((1, nb, out_lanes), lambda g: (g, 0, 0)),
                   pl.BlockSpec((1, nb, out_lanes), lambda g: (g, 0, 0))),
        compiler_params=pltpu.CompilerParams(
            dimension_semantics=("parallel",),   # batch blocks are independent (v7x: 2 TCs)
            vmem_limit_bytes=vmem_limit),
    )(gt, logits)

    bce_per = bce_out.reshape(n_pad, out_lanes)[:N, 0]
    dice_per = dice_out.reshape(n_pad, out_lanes)[:N, 0]

    # F.binary_cross_entropy_with_logits default 'mean' over N*C*H*W (C == 1).
    bce_loss = jnp.sum(bce_per) / (N * H * W)
    dice_loss = jnp.mean(dice_per)
    return bce_loss, dice_loss


if __name__ == "__main__":
    key = jax.random.PRNGKey(0)
    k1, k2 = jax.random.split(key)
    N, H, W = 2, 16, 16
    boundary_logits = jax.random.normal(k1, (N, 1, H, W), dtype=jnp.float32)
    gtmasks = (jax.random.uniform(k2, (N, H, W)) > 0.5).astype(jnp.float32)

    bce, dice = jax.jit(detail_aggregate_loss)(boundary_logits, gtmasks)
    jax.block_until_ready((bce, dice))
    print("KERNEL_OK")
</pallas_src>

<mosaic_0001>
module attributes {stable_mosaic.version = 11 : i64} {
  func.func @_detail_kernel(%arg0: i32, %arg1: memref<2x16x16xf32, #tpu.memory_space<vmem>>, %arg2: memref<2x16x16xf32, #tpu.memory_space<vmem>>, %arg3: memref<1x2x128xf32, #tpu.memory_space<vmem>>, %arg4: memref<1x2x128xf32, #tpu.memory_space<vmem>>) attributes {dimension_semantics = [#tpu.dimension_semantics<parallel>], iteration_bounds = array<i64: 1>, scalar_prefetch = 0 : i64, scratch_operands = 0 : i64, tpu.core_type = #tpu.core_type<tc>, window_params = [{transform_indices = @transform_0, window_bounds = array<i64: 2, 16, 16>}, {transform_indices = @transform_1, window_bounds = array<i64: 2, 16, 16>}, {transform_indices = @transform_2, window_bounds = array<i64: 1, 2, 128>}, {transform_indices = @transform_3, window_bounds = array<i64: 1, 2, 128>}]} {
    %c0 = arith.constant 0 : index
    %c0_0 = arith.constant 0 : index
    %c0_1 = arith.constant 0 : index
    %0 = vector.load %arg1[%c0, %c0_0, %c0_1] : memref<2x16x16xf32, #tpu.memory_space<vmem>>, vector<2x16x16xf32>
    %c0_2 = arith.constant 0 : index
    %c0_3 = arith.constant 0 : index
    %c0_4 = arith.constant 0 : index
    %1 = vector.load %arg2[%c0_2, %c0_3, %c0_4] : memref<2x16x16xf32, #tpu.memory_space<vmem>>, vector<2x16x16xf32>
    %cst = arith.constant 0.000000e+00 : f32
    %2 = vector.broadcast %cst : f32 to vector<2x1x16xf32>
    %3 = vector.extract_strided_slice %0 {offsets = [0, 0, 0], sizes = [2, 15, 16], strides = [1, 1, 1]} : vector<2x16x16xf32> to vector<2x15x16xf32>
    %4 = tpu.concatenate %2, %3 in 1 : vector<2x1x16xf32>, vector<2x15x16xf32> -> vector<2x16x16xf32>
    %5 = arith.addf %0, %4 : vector<2x16x16xf32>
    %6 = vector.extract_strided_slice %0 {offsets = [0, 1, 0], sizes = [2, 15, 16], strides = [1, 1, 1]} : vector<2x16x16xf32> to vector<2x15x16xf32>
    %cst_5 = arith.constant 0.000000e+00 : f32
    %7 = vector.broadcast %cst_5 : f32 to vector<2x1x16xf32>
    %8 = tpu.concatenate %6, %7 in 1 : vector<2x15x16xf32>, vector<2x1x16xf32> -> vector<2x16x16xf32>
    %9 = arith.addf %5, %8 : vector<2x16x16xf32>
    %cst_6 = arith.constant 0.000000e+00 : f32
    %10 = vector.broadcast %cst_6 : f32 to vector<2x16x1xf32>
    %11 = vector.extract_strided_slice %9 {offsets = [0, 0, 0], sizes = [2, 16, 15], strides = [1, 1, 1]} : vector<2x16x16xf32> to vector<2x16x15xf32>
    %12 = tpu.concatenate %10, %11 in 2 : vector<2x16x1xf32>, vector<2x16x15xf32> -> vector<2x16x16xf32>
    %13 = arith.addf %9, %12 : vector<2x16x16xf32>
    %14 = vector.extract_strided_slice %9 {offsets = [0, 0, 1], sizes = [2, 16, 15], strides = [1, 1, 1]} : vector<2x16x16xf32> to vector<2x16x15xf32>
    %cst_7 = arith.constant 0.000000e+00 : f32
    %15 = vector.broadcast %cst_7 : f32 to vector<2x16x1xf32>
    %16 = tpu.concatenate %14, %15 in 2 : vector<2x16x15xf32>, vector<2x16x1xf32> -> vector<2x16x16xf32>
    %17 = arith.addf %13, %16 : vector<2x16x16xf32>
    %cst_8 = arith.constant 9.000000e+00 : f32
    %18 = vector.broadcast %cst_8 : f32 to vector<2x16x16xf32>
    %19 = arith.mulf %18, %0 : vector<2x16x16xf32>
    %20 = arith.subf %19, %17 : vector<2x16x16xf32>
    %cst_9 = arith.constant 1.000000e-01 : f32
    %21 = vector.broadcast %cst_9 : f32 to vector<2x16x16xf32>
    %22 = arith.cmpf ogt, %20, %21 : vector<2x16x16xf32>
    %23 = arith.extui %22 : vector<2x16x16xi1> to vector<2x16x16xi32>
    %24 = arith.sitofp %23 : vector<2x16x16xi32> to vector<2x16x16xf32>
    %25 = tpu.iota {dimensions = array<i32: 1>} : vector<2x16x16xi32>
    %26 = tpu.iota {dimensions = array<i32: 2>} : vector<2x16x16xi32>
    %c1_i32 = arith.constant 1 : i32
    %27 = vector.broadcast %c1_i32 : i32 to vector<2x16x16xi32>
    %28 = arith.andi %25, %27 : vector<2x16x16xi32>
    %c0_i32 = arith.constant 0 : i32
    %29 = vector.broadcast %c0_i32 : i32 to vector<2x16x16xi32>
    %30 = arith.cmpi eq, %28, %29 : vector<2x16x16xi32>
    %cst_10 = arith.constant 0.000000e+00 : f32
    %31 = vector.broadcast %cst_10 : f32 to vector<2x1x16xf32>
    %32 = vector.extract_strided_slice %20 {offsets = [0, 0, 0], sizes = [2, 15, 16], strides = [1, 1, 1]} : vector<2x16x16xf32> to vector<2x15x16xf32>
    %33 = tpu.concatenate %31, %32 in 1 : vector<2x1x16xf32>, vector<2x15x16xf32> -> vector<2x16x16xf32>
    %34 = arith.select %30, %20, %33 : vector<2x16x16xi1>, vector<2x16x16xf32>
    %c3_i32 = arith.constant 3 : i32
    %35 = vector.broadcast %c3_i32 : i32 to vector<2x16x16xi32>
    %36 = arith.andi %25, %35 : vector<2x16x16xi32>
    %c2_i32 = arith.constant 2 : i32
    %37 = vector.broadcast %c2_i32 : i32 to vector<2x16x16xi32>
    %38 = arith.cmpi slt, %36, %37 : vector<2x16x16xi32>
    %cst_11 = arith.constant 0.000000e+00 : f32
    %39 = vector.broadcast %cst_11 : f32 to vector<2x2x16xf32>
    %40 = vector.extract_strided_slice %34 {offsets = [0, 0, 0], sizes = [2, 14, 16], strides = [1, 1, 1]} : vector<2x16x16xf32> to vector<2x14x16xf32>
    %41 = tpu.concatenate %39, %40 in 1 : vector<2x2x16xf32>, vector<2x14x16xf32> -> vector<2x16x16xf32>
    %42 = arith.select %38, %34, %41 : vector<2x16x16xi1>, vector<2x16x16xf32>
    %c1_i32_12 = arith.constant 1 : i32
    %43 = vector.broadcast %c1_i32_12 : i32 to vector<2x16x16xi32>
    %44 = arith.andi %26, %43 : vector<2x16x16xi32>
    %c0_i32_13 = arith.constant 0 : i32
    %45 = vector.broadcast %c0_i32_13 : i32 to vector<2x16x16xi32>
    %46 = arith.cmpi eq, %44, %45 : vector<2x16x16xi32>
    %cst_14 = arith.constant 0.000000e+00 : f32
    %47 = vector.broadcast %cst_14 : f32 to vector<2x16x1xf32>
    %48 = vector.extract_strided_slice %34 {offsets = [0, 0, 0], sizes = [2, 16, 15], strides = [1, 1, 1]} : vector<2x16x16xf32> to vector<2x16x15xf32>
    %49 = tpu.concatenate %47, %48 in 2 : vector<2x16x1xf32>, vector<2x16x15xf32> -> vector<2x16x16xf32>
    %50 = arith.select %46, %34, %49 : vector<2x16x16xi1>, vector<2x16x16xf32>
    %c1_i32_15 = arith.constant 1 : i32
    %51 = vector.broadcast %c1_i32_15 : i32 to vector<2x16x16xi32>
    %52 = arith.andi %26, %51 : vector<2x16x16xi32>
    %c0_i32_16 = arith.constant 0 : i32
    %53 = vector.broadcast %c0_i32_16 : i32 to vector<2x16x16xi32>
    %54 = arith.cmpi eq, %52, %53 : vector<2x16x16xi32>
    %cst_17 = arith.constant 0.000000e+00 : f32
    %55 = vector.broadcast %cst_17 : f32 to vector<2x16x1xf32>
    %56 = vector.extract_strided_slice %42 {offsets = [0, 0, 0], sizes = [2, 16, 15], strides = [1, 1, 1]} : vector<2x16x16xf32> to vector<2x16x15xf32>
    %57 = tpu.concatenate %55, %56 in 2 : vector<2x16x1xf32>, vector<2x16x15xf32> -> vector<2x16x16xf32>
    %58 = arith.select %54, %42, %57 : vector<2x16x16xi1>, vector<2x16x16xf32>
    %c3_i32_18 = arith.constant 3 : i32
    %59 = vector.broadcast %c3_i32_18 : i32 to vector<2x16x16xi32>
    %60 = arith.andi %26, %59 : vector<2x16x16xi32>
    %c2_i32_19 = arith.constant 2 : i32
    %61 = vector.broadcast %c2_i32_19 : i32 to vector<2x16x16xi32>
    %62 = arith.cmpi slt, %60, %61 : vector<2x16x16xi32>
    %cst_20 = arith.constant 0.000000e+00 : f32
    %63 = vector.broadcast %cst_20 : f32 to vector<2x16x2xf32>
    %64 = vector.extract_strided_slice %58 {offsets = [0, 0, 0], sizes = [2, 16, 14], strides = [1, 1, 1]} : vector<2x16x16xf32> to vector<2x16x14xf32>
    %65 = tpu.concatenate %63, %64 in 2 : vector<2x16x2xf32>, vector<2x16x14xf32> -> vector<2x16x16xf32>
    %66 = arith.select %62, %58, %65 : vector<2x16x16xi1>, vector<2x16x16xf32>
    %cst_21 = arith.constant 1.000000e-01 : f32
    %67 = vector.broadcast %cst_21 : f32 to vector<2x16x16xf32>
    %68 = arith.cmpf ogt, %50, %67 : vector<2x16x16xf32>
    %69 = arith.extui %68 : vector<2x16x16xi1> to vector<2x16x16xi32>
    %70 = arith.sitofp %69 : vector<2x16x16xi32> to vector<2x16x16xf32>
    %cst_22 = arith.constant 1.000000e-01 : f32
    %71 = vector.broadcast %cst_22 : f32 to vector<2x16x16xf32>
    %72 = arith.cmpf ogt, %66, %71 : vector<2x16x16xf32>
    %73 = arith.extui %72 : vector<2x16x16xi1> to vector<2x16x16xi32>
    %74 = arith.sitofp %73 : vector<2x16x16xi32> to vector<2x16x16xf32>
    %cst_23 = arith.constant 6.000000e-01 : f32
    %75 = vector.broadcast %cst_23 : f32 to vector<2x16x16xf32>
    %76 = arith.mulf %75, %24 : vector<2x16x16xf32>
    %cst_24 = arith.constant 3.000000e-01 : f32
    %77 = vector.broadcast %cst_24 : f32 to vector<2x16x16xf32>
    %78 = arith.mulf %77, %70 : vector<2x16x16xf32>
    %79 = arith.addf %76, %78 : vector<2x16x16xf32>
    %cst_25 = arith.constant 1.000000e-01 : f32
    %80 = vector.broadcast %cst_25 : f32 to vector<2x16x16xf32>
    %81 = arith.mulf %80, %74 : vector<2x16x16xf32>
    %82 = arith.addf %79, %81 : vector<2x16x16xf32>
    %cst_26 = arith.constant 1.000000e-01 : f32
    %83 = vector.broadcast %cst_26 : f32 to vector<2x16x16xf32>
    %84 = arith.cmpf ogt, %82, %83 : vector<2x16x16xf32>
    %85 = arith.extui %84 : vector<2x16x16xi1> to vector<2x16x16xi32>
    %86 = arith.sitofp %85 : vector<2x16x16xi32> to vector<2x16x16xf32>
    %87 = math.absf %1 : vector<2x16x16xf32>
    %cst_27 = arith.constant 0.000000e+00 : f32
    %88 = vector.broadcast %cst_27 : f32 to vector<2x16x16xf32>
    %89 = arith.subf %88, %87 : vector<2x16x16xf32>
    %90 = math.exp %89 : vector<2x16x16xf32>
    %cst_28 = arith.constant 0.000000e+00 : f32
    %91 = vector.broadcast %cst_28 : f32 to vector<2x16x16xf32>
    %92 = arith.maximumf %1, %91 : vector<2x16x16xf32>
    %93 = arith.mulf %1, %86 : vector<2x16x16xf32>
    %94 = arith.subf %92, %93 : vector<2x16x16xf32>
    %cst_29 = arith.constant 1.000000e+00 : f32
    %95 = vector.broadcast %cst_29 : f32 to vector<2x16x16xf32>
    %96 = arith.addf %95, %90 : vector<2x16x16xf32>
    %97 = math.log %96 : vector<2x16x16xf32>
    %98 = arith.addf %94, %97 : vector<2x16x16xf32>
    %cst_30 = arith.constant 1.000000e+00 : f32
    %99 = vector.broadcast %cst_30 : f32 to vector<2x16x16xf32>
    %100 = arith.addf %99, %90 : vector<2x16x16xf32>
    %101 = tpu.reciprocal %100 {approx = true} : vector<2x16x16xf32> -> vector<2x16x16xf32>
    %cst_31 = arith.constant 0.000000e+00 : f32
    %102 = vector.broadcast %cst_31 : f32 to vector<2x16x16xf32>
    %103 = arith.cmpf oge, %1, %102 : vector<2x16x16xf32>
    %104 = arith.mulf %90, %101 : vector<2x16x16xf32>
    %105 = arith.select %103, %101, %104 : vector<2x16x16xi1>, vector<2x16x16xf32>
    %cst_32 = arith.constant dense<0.000000e+00> : vector<2x16xf32>
    %106 = vector.multi_reduction <add>, %98, %cst_32 [2] : vector<2x16x16xf32> to vector<2x16xf32>
    %cst_33 = arith.constant dense<0.000000e+00> : vector<2xf32>
    %107 = vector.multi_reduction <add>, %106, %cst_33 [1] : vector<2x16xf32> to vector<2xf32>
    %108 = vector.shape_cast %107 : vector<2xf32> to vector<2x1xf32>
    %109 = arith.mulf %105, %86 : vector<2x16x16xf32>
    %cst_34 = arith.constant dense<0.000000e+00> : vector<2x16xf32>
    %110 = vector.multi_reduction <add>, %109, %cst_34 [2] : vector<2x16x16xf32> to vector<2x16xf32>
    %cst_35 = arith.constant dense<0.000000e+00> : vector<2xf32>
    %111 = vector.multi_reduction <add>, %110, %cst_35 [1] : vector<2x16xf32> to vector<2xf32>
    %112 = vector.shape_cast %111 : vector<2xf32> to vector<2x1xf32>
    %cst_36 = arith.constant dense<0.000000e+00> : vector<2x16xf32>
    %113 = vector.multi_reduction <add>, %105, %cst_36 [2] : vector<2x16x16xf32> to vector<2x16xf32>
    %cst_37 = arith.constant dense<0.000000e+00> : vector<2xf32>
    %114 = vector.multi_reduction <add>, %113, %cst_37 [1] : vector<2x16xf32> to vector<2xf32>
    %115 = vector.shape_cast %114 : vector<2xf32> to vector<2x1xf32>
    %cst_38 = arith.constant dense<0.000000e+00> : vector<2x16xf32>
    %116 = vector.multi_reduction <add>, %86, %cst_38 [2] : vector<2x16x16xf32> to vector<2x16xf32>
    %cst_39 = arith.constant dense<0.000000e+00> : vector<2xf32>
    %117 = vector.multi_reduction <add>, %116, %cst_39 [1] : vector<2x16xf32> to vector<2xf32>
    %118 = vector.shape_cast %117 : vector<2xf32> to vector<2x1xf32>
    %cst_40 = arith.constant 2.000000e+00 : f32
    %119 = vector.broadcast %cst_40 : f32 to vector<2x1xf32>
    %120 = arith.mulf %119, %112 : vector<2x1xf32>
    %cst_41 = arith.constant 1.000000e+00 : f32
    %121 = vector.broadcast %cst_41 : f32 to vector<2x1xf32>
    %122 = arith.addf %120, %121 : vector<2x1xf32>
    %123 = arith.addf %115, %118 : vector<2x1xf32>
    %cst_42 = arith.constant 1.000000e+00 : f32
    %124 = vector.broadcast %cst_42 : f32 to vector<2x1xf32>
    %125 = arith.addf %123, %124 : vector<2x1xf32>
    %126 = arith.divf %122, %125 : vector<2x1xf32>
    %cst_43 = arith.constant 1.000000e+00 : f32
    %127 = vector.broadcast %cst_43 : f32 to vector<2x1xf32>
    %128 = arith.subf %127, %126 : vector<2x1xf32>
    %129 = vector.shape_cast %108 : vector<2x1xf32> to vector<2x1xf32>
    %130 = vector.broadcast %129 : vector<2x1xf32> to vector<2x128xf32>
    %c0_44 = arith.constant 0 : index
    %c0_45 = arith.constant 0 : index
    %c0_46 = arith.constant 0 : index
    %131 = vector.load %arg3[%c0_44, %c0_45, %c0_46] : memref<1x2x128xf32, #tpu.memory_space<vmem>>, vector<1x2x128xf32>
    %132 = vector.shape_cast %131 : vector<1x2x128xf32> to vector<2x128xf32>
    %133 = vector.shape_cast %130 : vector<2x128xf32> to vector<1x2x128xf32>
    tpu.vector_store %arg3[%c0_44, %c0_45, %c0_46], %133 {strides = array<i32>} : memref<1x2x128xf32, #tpu.memory_space<vmem>>, vector<1x2x128xf32>,
    %134 = vector.shape_cast %128 : vector<2x1xf32> to vector<2x1xf32>
    %135 = vector.broadcast %134 : vector<2x1xf32> to vector<2x128xf32>
    %c0_47 = arith.constant 0 : index
    %c0_48 = arith.constant 0 : index
    %c0_49 = arith.constant 0 : index
    %136 = vector.load %arg4[%c0_47, %c0_48, %c0_49] : memref<1x2x128xf32, #tpu.memory_space<vmem>>, vector<1x2x128xf32>
    %137 = vector.shape_cast %136 : vector<1x2x128xf32> to vector<2x128xf32>
    %138 = vector.shape_cast %135 : vector<2x128xf32> to vector<1x2x128xf32>
    tpu.vector_store %arg4[%c0_47, %c0_48, %c0_49], %138 {strides = array<i32>} : memref<1x2x128xf32, #tpu.memory_space<vmem>>, vector<1x2x128xf32>,
    return
  }
  func.func @transform_0(%arg0: i32) -> (i32, i32, i32) {
    %c0_i32 = arith.constant 0 : i32
    %c0_i32_0 = arith.constant 0 : i32
    %c0_i32_1 = arith.constant 0 : i32
    return %arg0, %c0_i32, %c0_i32_0 : i32, i32, i32
  }
  func.func @transform_1(%arg0: i32) -> (i32, i32, i32) {
    %c0_i32 = arith.constant 0 : i32
    %c0_i32_0 = arith.constant 0 : i32
    %c0_i32_1 = arith.constant 0 : i32
    return %arg0, %c0_i32, %c0_i32_0 : i32, i32, i32
  }
  func.func @transform_2(%arg0: i32) -> (i32, i32, i32) {
    %c0_i32 = arith.constant 0 : i32
    %c0_i32_0 = arith.constant 0 : i32
    %c0_i32_1 = arith.constant 0 : i32
    return %arg0, %c0_i32, %c0_i32_0 : i32, i32, i32
  }
  func.func @transform_3(%arg0: i32) -> (i32, i32, i32) {
    %c0_i32 = arith.constant 0 : i32
    %c0_i32_0 = arith.constant 0 : i32
    %c0_i32_1 = arith.constant 0 : i32
    return %arg0, %c0_i32, %c0_i32_0 : i32, i32, i32
  }
}

</mosaic_0001>

<llo_original>
// kernel: detail_aggregate_loss.1
$region0: #{detail_aggregate_loss.1}
  #allocation0 [shape = 'u32[]', space=smem, size = 0x4, offset = 0x4, fixed_abs, tag = 'smem constant byte address 0x4 - core index']
  #allocation1 [shape = 'u32[72,128]{1,0:T(1,128)}', space=vmem, size = 0x9000, scoped, tag = 'internal scratch']
  %s0 = inlined_call_operand.hbm [shape: f32[2,16,16], index: 0, kind: input, shape index: {}]
  %s1 = inlined_call_operand.hbm [shape: f32[2,16,16], index: 1, kind: input, shape index: {}]
  %s2 = inlined_call_operand.vmem [shape: f32[1,2,128], index: 2, kind: output, shape index: {0}]
  %s3 = inlined_call_operand.vmem [shape: f32[1,2,128], index: 3, kind: output, shape index: {1}]
  %4 = xla_tuple %s2, %s3
  %s5 = sld [smem:[#allocation0]]
  $region34: #{detail_aggregate_loss.1} parent=0
    _
  %s7 = ssub.s32 1, %s5
  %s8 = scalar_select 0, %s7, %s5
  $region1: #{detail_aggregate_loss.1} parent=0
    #allocation2 [shape = 'u8[16384]{0}', space=vmem, size = 0x4000, scoped, tag = 'input window, operand 0, single buffered']
    #allocation3 [shape = 's32[1]{0}', space=sflag, size = 0x4, scoped, tag = 'scoped memory for detail_aggregate_loss.1']
    #allocation4 [shape = 'u8[16384]{0}', space=vmem, size = 0x4000, scoped, tag = 'input window, operand 1, single buffered']
    #allocation5 [shape = 's32[1]{0}', space=sflag, size = 0x4, scoped, tag = 'scoped memory for detail_aggregate_loss.1']
    %9 = vsyncpa [#allocation3], 0
    %10 = vsyncpa [#allocation5], 0
    // Predicated region
    $region2: #{detail_aggregate_loss.1} parent=1 // pred_check
      _
    $region3: #{detail_aggregate_loss.1} parent=1 // pred_check_branch
      %12 = sbr.rel (0) target = $region5
    $region4: #{detail_aggregate_loss.1} parent=1 // pred_region
      %14 = vsyncadd [#allocation3], 0
      %s15 = sshll.u32 %s0, 4
      %s16 = int_to_ptr.hbm [resolvable:$true] %s15
      %s17 = sshll.u32 [#allocation2], 4
      %s18 = int_to_ptr.vmem [resolvable:$true] %s17
      %23 = dma.hbm_to_vmem [thread:$0]  %s16, 512, %s18, [#allocation3], 128, 128, 8
    $region5: #{detail_aggregate_loss.1} parent=1 // pred_fallthru
      _
    // Predicated region
    $region6: #{detail_aggregate_loss.1} parent=1 // pred_check
      _
    $region7: #{detail_aggregate_loss.1} parent=1 // pred_check_branch
      %25 = sbr.rel (0) target = $region9
    $region8: #{detail_aggregate_loss.1} parent=1 // pred_region
      %27 = vsyncadd [#allocation5], 0
      %s28 = sshll.u32 %s1, 4
      %s29 = int_to_ptr.hbm [resolvable:$true] %s28
      %s30 = sshll.u32 [#allocation4], 4
      %s31 = int_to_ptr.vmem [resolvable:$true] %s30
      %36 = dma.hbm_to_vmem [thread:$0]  %s29, 512, %s31, [#allocation5], 128, 128, 8
    $region9: #{detail_aggregate_loss.1} parent=1 // pred_fallthru
      _
    // Predicated region
    $region10: #{detail_aggregate_loss.1} parent=1 // pred_check
      _
    $region11: #{detail_aggregate_loss.1} parent=1 // pred_check_branch
      %38 = sbr.rel (0) target = $region13
    $region12: #{detail_aggregate_loss.1} parent=1 // pred_region
      %40 = dma.done [#allocation3], 512
    $region13: #{detail_aggregate_loss.1} parent=1 // pred_fallthru
      _
    // Predicated region
    $region14: #{detail_aggregate_loss.1} parent=1 // pred_check
      _
    $region15: #{detail_aggregate_loss.1} parent=1 // pred_check_branch
      %42 = sbr.rel (0) target = $region17
    $region16: #{detail_aggregate_loss.1} parent=1 // pred_region
      %44 = dma.done [#allocation5], 512
    $region17: #{detail_aggregate_loss.1} parent=1 // pred_fallthru
      _
    %v45 = vld [vmem:[#allocation2] sm:$0xff]
    %v46 = vld [vmem:[#allocation2 + $0x8] sm:$0xff]
    %v47 = vld [vmem:[#allocation2 + $0x10] sm:$0xff]
    %v48 = vld [vmem:[#allocation2 + $0x18] sm:$0xff]
    %v49 = vld [vmem:[#allocation4] sm:$0xff]
    %v50 = vld [vmem:[#allocation4 + $0x8] sm:$0xff]
    %v51 = vld [vmem:[#allocation4 + $0x10] sm:$0xff]
    %v52 = vld [vmem:[#allocation4 + $0x18] sm:$0xff]
    %vm57 = vcmask 1040384
    %v58 = vrot.slane %v45, 7
    %v59 = vrot.slane %v46, 7
    %v60 = vsel %vm57, %v58, %v59
    %v61 = vrot.slane %v47, 7
    %v62 = vrot.slane %v48, 7
    %v63 = vsel %vm57, %v61, %v62
    %v68 = vsel %vm57, 0.0, %v58
    %v69 = vsel %vm57, 0.0, %v61
    %v70 = vadd.f32 %v45, %v68
    %v71 = vadd.f32 %v46, %v60
    %v72 = vadd.f32 %v47, %v69
    %v73 = vadd.f32 %v48, %v63
    %vm74 = vcmask 1046528
    %v75 = vrot.slane %v45, 1
    %v76 = vrot.slane %v46, 1
    %v77 = vsel %vm74, %v75, %v76
    %v78 = vrot.slane %v47, 1
    %v79 = vrot.slane %v48, 1
    %v80 = vsel %vm74, %v78, %v79
    %v85 = vsel %vm74, %v76, 0.0
    %v86 = vsel %vm74, %v79, 0.0
    %v87 = vadd.f32 %v70, %v77
    %v88 = vadd.f32 %v71, %v85
    %v89 = vadd.f32 %v72, %v80
    %v90 = vadd.f32 %v73, %v86
    %95 = vrot.lane.b32.xlu0 %v87, 1
    %v96 = vpop.permute.xlu0 %95
    %97 = vrot.lane.b32.xlu0 %v88, 1
    %v98 = vpop.permute.xlu0 %97
    %99 = vrot.lane.b32.xlu0 %v89, 1
    %v100 = vpop.permute.xlu0 %99
    %101 = vrot.lane.b32.xlu0 %v90, 1
    %v102 = vpop.permute.xlu0 %101
    %vm107 = vcmask 7168
    %v108 = vsel %vm107, 0.0, %v96
    %v109 = vsel %vm107, 0.0, %v98
    %v110 = vsel %vm107, 0.0, %v100
    %v111 = vsel %vm107, 0.0, %v102
    %v112 = vadd.f32 %v87, %v108
    %v113 = vadd.f32 %v88, %v109
    %v114 = vadd.f32 %v89, %v110
    %v115 = vadd.f32 %v90, %v111
    %116 = vrot.lane.b32.xlu0 %v87, 127
    %v117 = vpop.permute.xlu0 %116
    %118 = vrot.lane.b32.xlu0 %v88, 127
    %v119 = vpop.permute.xlu0 %118
    %120 = vrot.lane.b32.xlu0 %v89, 127
    %v121 = vpop.permute.xlu0 %120
    %122 = vrot.lane.b32.xlu0 %v90, 127
    %v123 = vpop.permute.xlu0 %122
    %vm128 = vcmask 121856
    %v129 = vsel %vm128, %v117, 0.0
    %v130 = vsel %vm128, %v119, 0.0
    %v131 = vsel %vm128, %v121, 0.0
    %v132 = vsel %vm128, %v123, 0.0
    %v133 = vadd.f32 %v112, %v129
    %v134 = vadd.f32 %v113, %v130
    %v135 = vadd.f32 %v114, %v131
    %v136 = vadd.f32 %v115, %v132
    %v137 = vmul.f32 %v45, 9.0
    %v138 = vmul.f32 %v46, 9.0
    %v139 = vmul.f32 %v47, 9.0
    %v140 = vmul.f32 %v48, 9.0
    %v141 = vsub.f32 %v137, %v133
    %v142 = vsub.f32 %v138, %v134
    %v143 = vsub.f32 %v139, %v135
    %v144 = vsub.f32 %v140, %v136
    %vm145 = vcmp.gt.f32.partialorder %v141, 0.1
    %vm146 = vcmp.gt.f32.partialorder %v142, 0.1
    %vm147 = vcmp.gt.f32.partialorder %v143, 0.1
    %vm148 = vcmp.gt.f32.partialorder %v144, 0.1
    %v149 = vsel %vm145, 1, 0
    %v150 = vsel %vm146, 1, 0
    %v151 = vsel %vm147, 1, 0
    %v152 = vsel %vm148, 1, 0
    %v153 = vcvt.s32.f32 %v149
    %v154 = vcvt.s32.f32 %v150
    %v155 = vcvt.s32.f32 %v151
    %v156 = vcvt.s32.f32 %v152
    %v157 = vlaneseq
    %v158 = vshrl.u32 %v157, 7
    %v159 = vadd.s32 %v158, 8
    %v160 = vlaneseq
    %v161 = vand.u32 %v160, 127
    %v162 = vand.u32 %v158, 1
    %v163 = vand.u32 %v159, 1
    %vm164 = vcmp.eq.s32.totalorder %v162, 0
    %vm165 = vcmp.eq.s32.totalorder %v163, 0
    %v170 = vrot.slane %v141, 7
    %v171 = vrot.slane %v142, 7
    %v172 = vsel %vm57, %v170, %v171
    %v173 = vrot.slane %v143, 7
    %v174 = vrot.slane %v144, 7
    %v175 = vsel %vm57, %v173, %v174
    %v180 = vsel %vm57, 0.0, %v170
    %v181 = vsel %vm57, 0.0, %v173
    %v182 = vsel %vm164, %v141, %v180
    %v183 = vsel %vm165, %v142, %v172
    %v184 = vsel %vm164, %v143, %v181
    %v185 = vsel %vm165, %v144, %v175
    %v186 = vand.u32 %v158, 3
    %v187 = vand.u32 %v159, 3
    %vm188 = vcmp.lt.s32.totalorder %v186, 2
    %vm189 = vcmp.lt.s32.totalorder %v187, 2
    %vm194 = vcmask 1041408
    %v195 = vrot.slane %v182, 6
    %v196 = vrot.slane %v183, 6
    %v197 = vsel %vm194, %v195, %v196
    %v198 = vrot.slane %v184, 6
    %v199 = vrot.slane %v185, 6
    %v200 = vsel %vm194, %v198, %v199
    %v205 = vsel %vm194, 0.0, %v195
    %v206 = vsel %vm194, 0.0, %v198
    %v207 = vsel %vm188, %v182, %v205
    %v208 = vsel %vm189, %v183, %v197
    %v209 = vsel %vm188, %v184, %v206
    %v210 = vsel %vm189, %v185, %v200
    %v211 = vand.u32 %v161, 1
    %vm212 = vcmp.eq.s32.totalorder %v211, 0
    %213 = vrot.lane.b32.xlu0 %v182, 1
    %v214 = vpop.permute.xlu0 %213
    %215 = vrot.lane.b32.xlu0 %v183, 1
    %v216 = vpop.permute.xlu0 %215
    %217 = vrot.lane.b32.xlu0 %v184, 1
    %v218 = vpop.permute.xlu0 %217
    %219 = vrot.lane.b32.xlu0 %v185, 1
    %v220 = vpop.permute.xlu0 %219
    %v225 = vsel %vm107, 0.0, %v214
    %v226 = vsel %vm107, 0.0, %v216
    %v227 = vsel %vm107, 0.0, %v218
    %v228 = vsel %vm107, 0.0, %v220
    %v229 = vsel %vm212, %v182, %v225
    %v230 = vsel %vm212, %v183, %v226
    %v231 = vsel %vm212, %v184, %v227
    %v232 = vsel %vm212, %v185, %v228
    %237 = vrot.lane.b32.xlu0 %v207, 1
    %v238 = vpop.permute.xlu0 %237
    %239 = vrot.lane.b32.xlu0 %v208, 1
    %v240 = vpop.permute.xlu0 %239
    %241 = vrot.lane.b32.xlu0 %v209, 1
    %v242 = vpop.permute.xlu0 %241
    %243 = vrot.lane.b32.xlu0 %v210, 1
    %v244 = vpop.permute.xlu0 %243
    %v249 = vsel %vm107, 0.0, %v238
    %v250 = vsel %vm107, 0.0, %v240
    %v251 = vsel %vm107, 0.0, %v242
    %v252 = vsel %vm107, 0.0, %v244
    %v253 = vsel %vm212, %v207, %v249
    %v254 = vsel %vm212, %v208, %v250
    %v255 = vsel %vm212, %v209, %v251
    %v256 = vsel %vm212, %v210, %v252
    %v257 = vand.u32 %v161, 3
    %vm258 = vcmp.lt.s32.totalorder %v257, 2
    %263 = vrot.lane.b32.xlu0 %v253, 2
    %v264 = vpop.permute.xlu0 %263
    %265 = vrot.lane.b32.xlu0 %v254, 2
    %v266 = vpop.permute.xlu0 %265
    %267 = vrot.lane.b32.xlu0 %v255, 2
    %v268 = vpop.permute.xlu0 %267
    %269 = vrot.lane.b32.xlu0 %v256, 2
    %v270 = vpop.permute.xlu0 %269
    %vm275 = vcmask 15360
    %v276 = vsel %vm275, 0.0, %v264
    %v277 = vsel %vm275, 0.0, %v266
    %v278 = vsel %vm275, 0.0, %v268
    %v279 = vsel %vm275, 0.0, %v270
    %v280 = vsel %vm258, %v253, %v276
    %v281 = vsel %vm258, %v254, %v277
    %v282 = vsel %vm258, %v255, %v278
    %v283 = vsel %vm258, %v256, %v279
    %vm284 = vcmp.gt.f32.partialorder %v229, 0.1
    %vm285 = vcmp.gt.f32.partialorder %v230, 0.1
    %vm286 = vcmp.gt.f32.partialorder %v231, 0.1
    %vm287 = vcmp.gt.f32.partialorder %v232, 0.1
    %v288 = vsel %vm284, 1, 0
    %v289 = vsel %vm285, 1, 0
    %v290 = vsel %vm286, 1, 0
    %v291 = vsel %vm287, 1, 0
    %v292 = vcvt.s32.f32 %v288
    %v293 = vcvt.s32.f32 %v289
    %v294 = vcvt.s32.f32 %v290
    %v295 = vcvt.s32.f32 %v291
    %vm296 = vcmp.gt.f32.partialorder %v280, 0.1
    %vm297 = vcmp.gt.f32.partialorder %v281, 0.1
    %vm298 = vcmp.gt.f32.partialorder %v282, 0.1
    %vm299 = vcmp.gt.f32.partialorder %v283, 0.1
    %v300 = vsel %vm296, 1, 0
    %v301 = vsel %vm297, 1, 0
    %v302 = vsel %vm298, 1, 0
    %v303 = vsel %vm299, 1, 0
    %v304 = vcvt.s32.f32 %v300
    %v305 = vcvt.s32.f32 %v301
    %v306 = vcvt.s32.f32 %v302
    %v307 = vcvt.s32.f32 %v303
    %v308 = vmul.f32 %v153, 0.6
    %v309 = vmul.f32 %v154, 0.6
    %v310 = vmul.f32 %v155, 0.6
    %v311 = vmul.f32 %v156, 0.6
    %v312 = vmul.f32 %v292, 0.3
    %v313 = vmul.f32 %v293, 0.3
    %v314 = vmul.f32 %v294, 0.3
    %v315 = vmul.f32 %v295, 0.3
    %v316 = vadd.f32 %v308, %v312
    %v317 = vadd.f32 %v309, %v313
    %v318 = vadd.f32 %v310, %v314
    %v319 = vadd.f32 %v311, %v315
    %v320 = vmul.f32 %v304, 0.1
    %v321 = vmul.f32 %v305, 0.1
    %v322 = vmul.f32 %v306, 0.1
    %v323 = vmul.f32 %v307, 0.1
    %v324 = vadd.f32 %v316, %v320
    %v325 = vadd.f32 %v317, %v321
    %v326 = vadd.f32 %v318, %v322
    %v327 = vadd.f32 %v319, %v323
    %vm328 = vcmp.gt.f32.partialorder %v324, 0.1
    %vm329 = vcmp.gt.f32.partialorder %v325, 0.1
    %vm330 = vcmp.gt.f32.partialorder %v326, 0.1
    %vm331 = vcmp.gt.f32.partialorder %v327, 0.1
    %v332 = vsel %vm328, 1, 0
    %v333 = vsel %vm329, 1, 0
    %v334 = vsel %vm330, 1, 0
    %v335 = vsel %vm331, 1, 0
    %v336 = vcvt.s32.f32 %v332
    %v337 = vcvt.s32.f32 %v333
    %v338 = vcvt.s32.f32 %v334
    %v339 = vcvt.s32.f32 %v335
    %v340 = vand.u32 2147483647, %v49
    %v341 = vand.u32 2147483647, %v50
    %v342 = vand.u32 2147483647, %v51
    %v343 = vand.u32 2147483647, %v52
    %v344 = vsub.f32 0.0, %v340
    %v345 = vsub.f32 0.0, %v341
    %v346 = vsub.f32 0.0, %v342
    %v347 = vsub.f32 0.0, %v343
    %v348 = vmul.f32 %v344, 1.442695
    %v349 = vpow.pop %v348
    %v350 = vmul.f32 %v345, 1.442695
    %v351 = vpow.pop %v350
    %v352 = vmul.f32 %v346, 1.442695
    %v353 = vpow.pop %v352
    %v354 = vmul.f32 %v347, 1.442695
    %v355 = vpow.pop %v354
    %v356 = vmax.f32 %v49, 0.0
    %v357 = vmax.f32 %v50, 0.0
    %v358 = vmax.f32 %v51, 0.0
    %v359 = vmax.f32 %v52, 0.0
    %v360 = vmul.f32 %v49, %v336
    %v361 = vmul.f32 %v50, %v337
    %v362 = vmul.f32 %v51, %v338
    %v363 = vmul.f32 %v52, %v339
    %v364 = vsub.f32 %v356, %v360
    %v365 = vsub.f32 %v357, %v361
    %v366 = vsub.f32 %v358, %v362
    %v367 = vsub.f32 %v359, %v363
    %v368 = vadd.f32 %v349, 1.0
    %v369 = vadd.f32 %v351, 1.0
    %v370 = vadd.f32 %v353, 1.0
    %v371 = vadd.f32 %v355, 1.0
    %v372 = vlog2.pop %v368
    %v373 = vmul.f32 %v372, 0.6931472
    %v374 = vlog2.pop %v369
    %v375 = vmul.f32 %v374, 0.6931472
    %v376 = vlog2.pop %v370
    %v377 = vmul.f32 %v376, 0.6931472
    %v378 = vlog2.pop %v371
    %v379 = vmul.f32 %v378, 0.6931472
    %v380 = vadd.f32 %v364, %v373
    %v381 = vadd.f32 %v365, %v375
    %v382 = vadd.f32 %v366, %v377
    %v383 = vadd.f32 %v367, %v379
    %v384 = vrcp.pop %v368
    %v385 = vrcp.pop %v369
    %v386 = vrcp.pop %v370
    %v387 = vrcp.pop %v371
    %vm388 = vcmp.ge.f32.partialorder %v49, 0.0
    %vm389 = vcmp.ge.f32.partialorder %v50, 0.0
    %vm390 = vcmp.ge.f32.partialorder %v51, 0.0
    %vm391 = vcmp.ge.f32.partialorder %v52, 0.0
    %v392 = vmul.f32 %v349, %v384
    %v393 = vmul.f32 %v351, %v385
    %v394 = vmul.f32 %v353, %v386
    %v395 = vmul.f32 %v355, %v387
    %v396 = vsel %vm388, %v384, %v392
    %v397 = vsel %vm389, %v385, %v393
    %v398 = vsel %vm390, %v386, %v394
    %v399 = vsel %vm391, %v387, %v395
    %vm400 = vcmask 130048
    %v401 = vsel %vm400, %v380, 0.0
    %402 = vadd.xlane.f32.xlu0 %v401
    %v403 = vpop.xlane.xlu0 %402
    %v404 = vsel %vm400, %v381, 0.0
    %405 = vadd.xlane.f32.xlu0 %v404
    %v406 = vpop.xlane.xlu0 %405
    %v407 = vsel %vm400, %v382, 0.0
    %408 = vadd.xlane.f32.xlu0 %v407
    %v409 = vpop.xlane.xlu0 %408
    %v410 = vsel %vm400, %v383, 0.0
    %411 = vadd.xlane.f32.xlu0 %v410
    %v412 = vpop.xlane.xlu0 %411
    %v417 = vperm.slane %v403, %v161
    %v418 = vadd.s32 %v161, 4294967288
    %v419 = vperm.slane %v406, %v418
    %vm420 = vcmask 130112
    %v421 = vsel %vm420, %v419, %v417
    %v422 = vperm.slane %v409, %v161
    %v423 = vperm.slane %v412, %v418
    %v424 = vsel %vm420, %v423, %v422
    %vm425 = vcmask 1041409
    %v426 = vsel %vm425, %v424, %v421
    %vm428 = vcmask 123904
    %v429 = vsel %vm428, %v426, 0.0
    %430 = vadd.xlane.f32.xlu0 %v429
    %v431 = vpop.xlane.xlu0 %430
    %v432 = vmul.f32 %v396, %v336
    %v433 = vmul.f32 %v397, %v337
    %v434 = vmul.f32 %v398, %v338
    %v435 = vmul.f32 %v399, %v339
    %v436 = vsel %vm400, %v432, 0.0
    %437 = vadd.xlane.f32.xlu0 %v436
    %v438 = vpop.xlane.xlu0 %437
    %v439 = vsel %vm400, %v433, 0.0
    %440 = vadd.xlane.f32.xlu0 %v439
    %v441 = vpop.xlane.xlu0 %440
    %v442 = vsel %vm400, %v434, 0.0
    %443 = vadd.xlane.f32.xlu0 %v442
    %v444 = vpop.xlane.xlu0 %443
    %v445 = vsel %vm400, %v435, 0.0
    %446 = vadd.xlane.f32.xlu0 %v445
    %v447 = vpop.xlane.xlu0 %446
    %v452 = vperm.slane %v438, %v161
    %v453 = vperm.slane %v441, %v418
    %v454 = vsel %vm420, %v453, %v452
    %v455 = vperm.slane %v444, %v161
    %v456 = vperm.slane %v447, %v418
    %v457 = vsel %vm420, %v456, %v455
    %v458 = vsel %vm425, %v457, %v454
    %v460 = vsel %vm428, %v458, 0.0
    %461 = vadd.xlane.f32.xlu0 %v460
    %v462 = vpop.xlane.xlu0 %461
    %v463 = vsel %vm400, %v396, 0.0
    %464 = vadd.xlane.f32.xlu0 %v463
    %v465 = vpop.xlane.xlu0 %464
    %v466 = vsel %vm400, %v397, 0.0
    %467 = vadd.xlane.f32.xlu0 %v466
    %v468 = vpop.xlane.xlu0 %467
    %v469 = vsel %vm400, %v398, 0.0
    %470 = vadd.xlane.f32.xlu0 %v469
    %v471 = vpop.xlane.xlu0 %470
    %v472 = vsel %vm400, %v399, 0.0
    %473 = vadd.xlane.f32.xlu0 %v472
    %v474 = vpop.xlane.xlu0 %473
    %v479 = vperm.slane %v465, %v161
    %v480 = vperm.slane %v468, %v418
    %v481 = vsel %vm420, %v480, %v479
    %v482 = vperm.slane %v471, %v161
    %v483 = vperm.slane %v474, %v418
    %v484 = vsel %vm420, %v483, %v482
    %v485 = vsel %vm425, %v484, %v481
    %v487 = vsel %vm428, %v485, 0.0
    %488 = vadd.xlane.f32.xlu0 %v487
    %v489 = vpop.xlane.xlu0 %488
    %v490 = vsel %vm400, %v336, 0.0
    %491 = vadd.xlane.f32.xlu0 %v490
    %v492 = vpop.xlane.xlu0 %491
    %v493 = vsel %vm400, %v337, 0.0
    %494 = vadd.xlane.f32.xlu0 %v493
    %v495 = vpop.xlane.xlu0 %494
    %v496 = vsel %vm400, %v338, 0.0
    %497 = vadd.xlane.f32.xlu0 %v496
    %v498 = vpop.xlane.xlu0 %497
    %v499 = vsel %vm400, %v339, 0.0
    %500 = vadd.xlane.f32.xlu0 %v499
    %v501 = vpop.xlane.xlu0 %500
    %v506 = vperm.slane %v492, %v161
    %v507 = vperm.slane %v495, %v418
    %v508 = vsel %vm420, %v507, %v506
    %v509 = vperm.slane %v498, %v161
    %v510 = vperm.slane %v501, %v418
    %v511 = vsel %vm420, %v510, %v509
    %v512 = vsel %vm425, %v511, %v508
    %v514 = vsel %vm428, %v512, 0.0
    %515 = vadd.xlane.f32.xlu0 %v514
    %v516 = vpop.xlane.xlu0 %515
    %v517 = vmul.f32 %v462, 2.0
    %v518 = vadd.f32 %v517, 1.0
    %v519 = vadd.f32 %v489, %v516
    %v520 = vadd.f32 %v519, 1.0
    %v521 = vrcp.pop %v520
    %v522 = vmul.f32 %v520, %v521
    %v523 = vsub.f32 1.0, %v522
    %v524 = vmul.f32 %v521, %v523
    %v525 = vadd.f32 %v521, %v524
    %vm526 = vweird.f32 %v520
    %vm527 = vweird.f32 %v521
    %vm528 = vmor %vm526, %vm527
    %v529 = vsel %vm528, %v521, %v525
    %v530 = vand.u32 2147483647, %v520
    %vm531 = vcmp.eq.f32.partialorder %v530, 8.507059e+37
    %v532 = vand.u32 %v520, 2147483648
    %v533 = vor.u32 1.1754944e-38, %v532
    %v534 = vsel %vm531, %v533, %v529
    %v535 = vmul.f32 %v518, %v534
    %v536 = vsub.f32 1.0, %v535
    %537 = vst [vmem:[%s2] sm:$0x3] %v431
    %538 = vst [vmem:[%s3] sm:$0x3] %v536
    // Predicated region
    $region18: #{detail_aggregate_loss.1} parent=1 // pred_check
      _
    $region19: #{detail_aggregate_loss.1} parent=1 // pred_check_branch
      %540 = sbr.rel (0) target = $region21
    $region20: #{detail_aggregate_loss.1} parent=1 // pred_region
      _
    $region21: #{detail_aggregate_loss.1} parent=1 // pred_fallthru
      _
    // Predicated region
    $region22: #{detail_aggregate_loss.1} parent=1 // pred_check
      _
    $region23: #{detail_aggregate_loss.1} parent=1 // pred_check_branch
      %542 = sbr.rel (0) target = $region25
    $region24: #{detail_aggregate_loss.1} parent=1 // pred_region
      _
    $region25: #{detail_aggregate_loss.1} parent=1 // pred_fallthru
      _
    // Predicated region
    $region26: #{detail_aggregate_loss.1} parent=1 // pred_check
      _
    $region27: #{detail_aggregate_loss.1} parent=1 // pred_check_branch
      %544 = sbr.rel (0) target = $region29
    $region28: #{detail_aggregate_loss.1} parent=1 // pred_region
      _
    $region29: #{detail_aggregate_loss.1} parent=1 // pred_fallthru
      _
    // Predicated region
    $region30: #{detail_aggregate_loss.1} parent=1 // pred_check
      _
    $region31: #{detail_aggregate_loss.1} parent=1 // pred_check_branch
      %546 = sbr.rel (0) target = $region33
    $region32: #{detail_aggregate_loss.1} parent=1 // pred_region
      _
    $region33: #{detail_aggregate_loss.1} parent=1 // pred_fallthru
      _
    %547 = vsyncpa [#allocation3], 1
    %548 = vsyncpa [#allocation5], 1

</llo_original>
